<compile_context>
chip_gen: v6e
topology: v6e:2x2x1
jax: 0.10.0
libtpu: 0.0.40
codegen_flags: <defaults>
</compile_context>

<pallas_src>
import jax
import jax.numpy as jnp
import numpy as np
from jax.experimental import pallas as pl
from jax.experimental.pallas import tpu as pltpu

DELTA = 1.0        # Huber delta of the module
LANE = 128         # TPU lane width
SUBLANE = 8        # TPU sublane count (f32)
_NEG_INF = -1e9    # padding value for extra class channels


def _round_up(x, m):
    return ((x + m - 1) // m) * m


def det_loss_kernel(pred_cls_ref, pred_box_ref, ycls_ref, ybox_ref,
                    neg_ref, sums_ref,
                    acc_pl, acc_pos, acc_neg, acc_box):
    """One (batch, anchor-tile) grid step.

    pred_cls_ref: (1, C_pad, TN)   logits (classes on sublanes, -1e9 padded)
    pred_box_ref: (1, 4,     TN)   predicted boxes
    ycls_ref:     (1, 1,     TN)   int32 labels (-1 ignore)
    ybox_ref:     (1, 4,     TN)   target boxes
    neg_ref:      (1, 1,     TN)   per-anchor negative CE (output)
    sums_ref:     (1, 1,     128)  per-batch scalars in lanes 0..3 (output)
    acc_*:        lane-wise VMEM accumulators, persist over the tile axis
    """
    n = pl.program_id(1)
    n_last = pl.num_programs(1) - 1

    # Zero the per-batch lane-wise accumulators at the first anchor tile.
    @pl.when(n == 0)
    def _():
        acc_pl[...] = jnp.zeros_like(acc_pl)
        acc_pos[...] = jnp.zeros_like(acc_pos)
        acc_neg[...] = jnp.zeros_like(acc_neg)
        acc_box[...] = jnp.zeros_like(acc_box)

    # --- cross entropy (classes on sublanes, anchors dense on lanes) --------
    # Only the class slice is upcast; f32 inputs make this a no-op.
    # (bf16 inputs: exp could stay bf16 on v6e/v7x; f32 kept here for parity
    #  with the torch reference numerics.)
    logits = pred_cls_ref[0].astype(jnp.float32)       # (C_pad, TN)
    ycls = ycls_ref[0]                                 # (1, TN) int32

    m = jnp.max(logits, axis=0, keepdims=True)         # (1, TN)
    ex = jnp.exp(logits - m)                           # padded rows -> exp(-inf)=0
    sum_exp = jnp.sum(ex, axis=0, keepdims=True)       # (1, TN)

    tgt = jnp.where(ycls < 0, 0, ycls)                 # clamp ignore labels
    cls_idx = jax.lax.broadcasted_iota(jnp.int32, logits.shape, 0)
    tgt_logit = jnp.sum(jnp.where(cls_idx == tgt, logits, 0.0),
                        axis=0, keepdims=True)         # (1, TN)
    ce = jnp.log(sum_exp) + m - tgt_logit              # (1, TN)

    # --- masks ---------------------------------------------------------------
    pos_f = (ycls > 0).astype(jnp.float32)             # (1, TN)
    neg_f = (ycls == 0).astype(jnp.float32)            # (1, TN)
    # box_mask (y >= 1) == pos_mask (y > 0) for integer labels.

    # Lane-dense per-anchor negative loss (mining done outside the kernel).
    neg_ref[...] = (ce * neg_f)[None]

    # --- Huber box loss --------------------------------------------------------
    diff = pred_box_ref[0].astype(jnp.float32) - ybox_ref[0].astype(jnp.float32)
    ad = jnp.abs(diff)
    huber = jnp.where(ad < DELTA, 0.5 * diff * diff, ad - 0.5 * DELTA)
    box = huber * pos_f                                # (4, TN)

    # --- deferred reductions: pure element-wise (VPU) accumulation ------------
    acc_pl[...] += ce * pos_f
    acc_pos[...] += pos_f
    acc_neg[...] += neg_f
    acc_box[...] += box

    # Cross-lane (XLU) reduce only once per batch, at the last anchor tile.
    @pl.when(n == n_last)
    def _():
        s_pos_loss = jnp.sum(acc_pl[...])
        s_pos_cnt = jnp.sum(acc_pos[...])
        s_neg_cnt = jnp.sum(acc_neg[...])
        s_box_loss = jnp.sum(acc_box[...])
        lane = jax.lax.broadcasted_iota(jnp.int32, sums_ref.shape, 2)
        sums_ref[...] = (jnp.where(lane == 0, s_pos_loss, 0.0)
                         + jnp.where(lane == 1, s_pos_cnt, 0.0)
                         + jnp.where(lane == 2, s_neg_cnt, 0.0)
                         + jnp.where(lane == 3, s_box_loss, 0.0))


def det_loss_pallas_core(pred_cls, pred_box, y_cls, y_box, tile_n):
    B, c_pad, Np = pred_cls.shape
    assert tile_n % LANE == 0 and Np % tile_n == 0 and c_pad % SUBLANE == 0
    n_tiles = Np // tile_n

    neg_loss, sums = pl.pallas_call(
        det_loss_kernel,
        out_shape=(jax.ShapeDtypeStruct((B, 1, Np), jnp.float32),
                   jax.ShapeDtypeStruct((B, 1, LANE), jnp.float32)),
        grid_spec=pltpu.PrefetchScalarGridSpec(
            num_scalar_prefetch=0,
            grid=(B, n_tiles),
            in_specs=[
                pl.BlockSpec((1, c_pad, tile_n), lambda b, n: (b, 0, n)),
                pl.BlockSpec((1, 4, tile_n), lambda b, n: (b, 0, n)),
                pl.BlockSpec((1, 1, tile_n), lambda b, n: (b, 0, n)),
                pl.BlockSpec((1, 4, tile_n), lambda b, n: (b, 0, n)),
            ],
            out_specs=[
                pl.BlockSpec((1, 1, tile_n), lambda b, n: (b, 0, n)),
                pl.BlockSpec((1, 1, LANE), lambda b, n: (b, 0, 0)),  # per-batch
            ],
            scratch_shapes=[
                pltpu.VMEM((1, tile_n), jnp.float32),   # sum ce*pos
                pltpu.VMEM((1, tile_n), jnp.float32),   # sum pos
                pltpu.VMEM((1, tile_n), jnp.float32),   # sum neg
                pltpu.VMEM((4, tile_n), jnp.float32),   # sum huber*pos
            ],
        ),
        compiler_params=pltpu.CompilerParams(
            # Batch axis can shard across TensorCores (v7x megacore); anchor
            # tile axis carries the per-batch accumulators -> arbitrary.
            dimension_semantics=("parallel", "arbitrary"),
            # Explicit scoped-VMEM budget (v5e default is only 16 MiB); the
            # adaptive tile sizing below keeps pipelined blocks well inside
            # this even on v7x's 64 MiB VMEM.
            vmem_limit_bytes=48 * 1024 * 1024,
        ),
    )(pred_cls, pred_box, y_cls, y_box)
    return neg_loss, sums


def det_loss(pred_list, y, detection_class_num, tile_n=None, hard_neg_cap=None):
    """Layout conversion, padding and hard-negative mining in JAX; the hot
    path (CE / Huber / masked reductions) in the Pallas kernel.

    hard_neg_cap: optional static cap on per-row hard negatives; when given,
    top_k uses k = min(cap, Np) (exact iff cap >= per-row negative count).
    """
    c1 = detection_class_num + 1
    c_pad = _round_up(c1, SUBLANE)
    B = pred_list[0].shape[0]

    # Channel-major layout with anchors on lanes. torch does
    # p.permute(0,3,2,1).reshape(B,-1,K+5), i.e. element [b, w*H+h, c] =
    # p[b,c,h,w]; channel-major equivalent: swap H<->W and flatten spatial.
    converted = []
    for p in pred_list:
        c5 = p.shape[1]
        pc = jnp.transpose(p, (0, 1, 3, 2)).reshape(B, c5, -1)   # (B, K+5, H*W)
        converted.append(pc)
    pred_all = jnp.concatenate(converted, axis=2)                # (B, K+5, N)
    N = pred_all.shape[2]

    pred_cls = pred_all[:, :c1, :]                               # (B, K+1, N)
    pred_box = pred_all[:, c1:, :]                               # (B, 4,   N)
    if c_pad > c1:
        # Pad class channels to a sublane multiple with -1e9 so class-axis
        # max / logsumexp are unchanged.
        pred_cls = jnp.pad(pred_cls, ((0, 0), (0, c_pad - c1), (0, 0)),
                           constant_values=_NEG_INF)

    # Labels as int32 (no f32 round-trip), boxes in native dtype.
    y_cls = y[:, :, 0].astype(jnp.int32)[:, None, :]             # (B, 1, N)
    y_box = jnp.transpose(y[:, :, 1:], (0, 2, 1))                # (B, 4, N)

    # --- anchor tile size: as large as the (v7x-safe) VMEM budget allows -----
    if tile_n is None:
        pred_isz = jnp.dtype(pred_all.dtype).itemsize
        ybox_isz = jnp.dtype(y_box.dtype).itemsize
        per_anchor_block = (c_pad + 4) * pred_isz + 4 + 4 * ybox_isz + 4
        per_anchor_scratch = 4 * SUBLANE * 4       # accumulators, sublane-padded
        budget = 28 * 1024 * 1024                  # pipelined-block budget
        cap = budget // (2 * per_anchor_block + per_anchor_scratch)
        tile_n = min(_round_up(N, 512), max((cap // 512) * 512, 512), 32768)
    else:
        tile_n = max(_round_up(tile_n, LANE), LANE)

    Np = _round_up(N, tile_n)
    pad = Np - N
    if pad:
        # Padded anchors: label -1 (excluded from every mask / count),
        # zero preds / targets -> all sums stay exact, CE there is finite.
        pred_cls = jnp.pad(pred_cls, ((0, 0), (0, 0), (0, pad)))
        pred_box = jnp.pad(pred_box, ((0, 0), (0, 0), (0, pad)))
        y_cls = jnp.pad(y_cls, ((0, 0), (0, 0), (0, pad)), constant_values=-1)
        y_box = jnp.pad(y_box, ((0, 0), (0, 0), (0, pad)))

    neg_loss, sums = det_loss_pallas_core(pred_cls, pred_box, y_cls, y_box, tile_n)

    totals = jnp.sum(sums, axis=(0, 1))            # reduce per-batch partials
    pos_loss_sum = totals[0]
    pos_cnt = totals[1]
    neg_cnt = totals[2]
    box_loss_sum = totals[3]
    box_cnt = pos_cnt                              # box_mask == pos_mask (int labels)

    # Hard-negative mining with data-dependent length (torch.sort + slice).
    # Bounded per-row top_k replaces the full descending sort; k = Np keeps it
    # exact when no static positive cap is known.
    # TODO(synk): sort/top_k has no TPU Pallas lowering; done in plain JAX.
    negative_len = jnp.minimum(pos_cnt * 3.0, neg_cnt)
    k = Np if hard_neg_cap is None else min(int(hard_neg_cap), Np)
    top_neg, _ = jax.lax.top_k(neg_loss[:, 0, :], k)             # (B, k) desc
    col = jnp.arange(k, dtype=jnp.float32)[None, :]
    hard_neg_sum = jnp.sum(jnp.where(col < negative_len, top_neg, 0.0))

    cls_loss = (pos_loss_sum + hard_neg_sum) / (pos_cnt + negative_len + 1e-8)
    box_loss = box_loss_sum / (box_cnt + 1e-8)
    loss = cls_loss + box_loss
    return loss, cls_loss, box_loss


# ----------------------------- pure-JAX reference -----------------------------
def det_loss_ref(pred_list, y, detection_class_num):
    k5 = detection_class_num + 1 + 4
    converted = []
    for p in pred_list:
        pc = jnp.transpose(p, (0, 3, 2, 1)).reshape(p.shape[0], -1, k5)
        converted.append(pc)
    pc = jnp.concatenate(converted, axis=1)
    pred_cls = pc[:, :, :-4]
    pred_box = pc[:, :, -4:]
    y_cls = y[:, :, 0].astype(jnp.int32)
    y_box = y[:, :, 1:]
    tgt = jnp.where(y_cls < 0, 0, y_cls)

    lse = jax.scipy.special.logsumexp(pred_cls, axis=-1)
    tgt_logit = jnp.take_along_axis(pred_cls, tgt[..., None], axis=-1)[..., 0]
    ce = lse - tgt_logit

    diff = pred_box - y_box
    ad = jnp.abs(diff)
    huber = jnp.where(ad < DELTA, 0.5 * diff * diff, ad - 0.5 * DELTA)

    pos_mask = (y_cls > 0).astype(jnp.float32)
    neg_mask = (y_cls == 0).astype(jnp.float32)
    box_mask = (y_cls >= 1).astype(jnp.float32)

    pos_len = jnp.sum(pos_mask)
    neg_len = jnp.minimum(pos_len * 3.0, jnp.sum(neg_mask))
    neg_loss = ce * neg_mask
    neg_sorted = jnp.sort(neg_loss, axis=-1)[:, ::-1]
    col = jnp.arange(neg_loss.shape[-1], dtype=jnp.float32)[None, :]
    hard = jnp.sum(jnp.where(col < neg_len, neg_sorted, 0.0))

    cls_loss = (jnp.sum(ce * pos_mask) + hard) / (pos_len + neg_len + 1e-8)
    box_loss = jnp.sum(huber * box_mask[..., None]) / (jnp.sum(box_mask) + 1e-8)
    return cls_loss + box_loss, cls_loss, box_loss


if __name__ == "__main__":
    B = 2
    detection_class_num = 4            # K -> channels per anchor = K + 1 + 4 = 9
    C = detection_class_num + 1 + 4    # one anchor per cell
    shapes = [(B, C, 8, 8), (B, C, 4, 4)]   # two pyramid levels (NCHW)
    N = sum(h * w for (_, _, h, w) in shapes)  # 64 + 16 = 80 anchors

    key = jax.random.PRNGKey(0)
    k1, k2, k3, k4 = jax.random.split(key, 4)
    pred_list = [
        jax.random.normal(k1, shapes[0], jnp.float32),
        jax.random.normal(k2, shapes[1], jnp.float32),
    ]
    y_cls = jax.random.randint(k3, (B, N), -1, detection_class_num + 1)
    y_box = jax.random.normal(k4, (B, N, 4), jnp.float32)
    y = jnp.concatenate([y_cls[..., None].astype(jnp.float32), y_box], axis=-1)

    loss, cls_loss, box_loss = det_loss(pred_list, y, detection_class_num)
    loss = jax.block_until_ready(loss)

    ref_loss, ref_cls, ref_box = det_loss_ref(pred_list, y, detection_class_num)
    assert np.allclose(np.asarray(loss), np.asarray(ref_loss), rtol=1e-4, atol=1e-4)
    assert np.allclose(np.asarray(cls_loss), np.asarray(ref_cls), rtol=1e-4, atol=1e-4)
    assert np.allclose(np.asarray(box_loss), np.asarray(ref_box), rtol=1e-4, atol=1e-4)

    print("KERNEL_OK")
</pallas_src>

<mosaic_0001>
module attributes {stable_mosaic.version = 11 : i64} {
  func.func @det_loss_kernel(%arg0: i32, %arg1: i32, %arg2: memref<1x8x512xf32, #tpu.memory_space<vmem>>, %arg3: memref<1x4x512xf32, #tpu.memory_space<vmem>>, %arg4: memref<1x1x512xi32, #tpu.memory_space<vmem>>, %arg5: memref<1x4x512xf32, #tpu.memory_space<vmem>>, %arg6: memref<1x1x512xf32, #tpu.memory_space<vmem>>, %arg7: memref<1x1x128xf32, #tpu.memory_space<vmem>>, %arg8: memref<1x512xf32, #tpu.memory_space<vmem>>, %arg9: memref<1x512xf32, #tpu.memory_space<vmem>>, %arg10: memref<1x512xf32, #tpu.memory_space<vmem>>, %arg11: memref<4x512xf32, #tpu.memory_space<vmem>>) attributes {dimension_semantics = [#tpu.dimension_semantics<parallel>, #tpu.dimension_semantics<arbitrary>], iteration_bounds = array<i64: 2, 1>, scalar_prefetch = 0 : i64, scratch_operands = 4 : i64, tpu.core_type = #tpu.core_type<tc>, window_params = [{transform_indices = @transform_0, window_bounds = array<i64: 1, 8, 512>}, {transform_indices = @transform_1, window_bounds = array<i64: 1, 4, 512>}, {transform_indices = @transform_2, window_bounds = array<i64: 1, 1, 512>}, {transform_indices = @transform_3, window_bounds = array<i64: 1, 4, 512>}, {transform_indices = @transform_4, window_bounds = array<i64: 1, 1, 512>}, {transform_indices = @transform_5, window_bounds = array<i64: 1, 1, 128>}]} {
    %c0_i32 = arith.constant 0 : i32
    %0 = arith.cmpi eq, %arg1, %c0_i32 : i32
    %1 = arith.extui %0 : i1 to i32
    %c0_i32_0 = arith.constant 0 : i32
    %2 = arith.cmpi ne, %1, %c0_i32_0 : i32
    scf.if %2 {
      %cst_43 = arith.constant 0.000000e+00 : f32
      %71 = vector.broadcast %cst_43 : f32 to vector<1x512xf32>
      %c0_44 = arith.constant 0 : index
      %c0_45 = arith.constant 0 : index
      %72 = vector.load %arg8[%c0_44, %c0_45] : memref<1x512xf32, #tpu.memory_space<vmem>>, vector<1x512xf32>
      tpu.vector_store %arg8[%c0_44, %c0_45], %71 {strides = array<i32>} : memref<1x512xf32, #tpu.memory_space<vmem>>, vector<1x512xf32>,
      %cst_46 = arith.constant 0.000000e+00 : f32
      %73 = vector.broadcast %cst_46 : f32 to vector<1x512xf32>
      %c0_47 = arith.constant 0 : index
      %c0_48 = arith.constant 0 : index
      %74 = vector.load %arg9[%c0_47, %c0_48] : memref<1x512xf32, #tpu.memory_space<vmem>>, vector<1x512xf32>
      tpu.vector_store %arg9[%c0_47, %c0_48], %73 {strides = array<i32>} : memref<1x512xf32, #tpu.memory_space<vmem>>, vector<1x512xf32>,
      %cst_49 = arith.constant 0.000000e+00 : f32
      %75 = vector.broadcast %cst_49 : f32 to vector<1x512xf32>
      %c0_50 = arith.constant 0 : index
      %c0_51 = arith.constant 0 : index
      %76 = vector.load %arg10[%c0_50, %c0_51] : memref<1x512xf32, #tpu.memory_space<vmem>>, vector<1x512xf32>
      tpu.vector_store %arg10[%c0_50, %c0_51], %75 {strides = array<i32>} : memref<1x512xf32, #tpu.memory_space<vmem>>, vector<1x512xf32>,
      %cst_52 = arith.constant 0.000000e+00 : f32
      %77 = vector.broadcast %cst_52 : f32 to vector<4x512xf32>
      %c0_53 = arith.constant 0 : index
      %c0_54 = arith.constant 0 : index
      %78 = vector.load %arg11[%c0_53, %c0_54] : memref<4x512xf32, #tpu.memory_space<vmem>>, vector<4x512xf32>
      tpu.vector_store %arg11[%c0_53, %c0_54], %77 {strides = array<i32>} : memref<4x512xf32, #tpu.memory_space<vmem>>, vector<4x512xf32>,
    } else {
    }
    %c0 = arith.constant 0 : index
    %c0_1 = arith.constant 0 : index
    %c0_2 = arith.constant 0 : index
    %3 = vector.load %arg2[%c0, %c0_1, %c0_2] : memref<1x8x512xf32, #tpu.memory_space<vmem>>, vector<1x8x512xf32>
    %4 = vector.shape_cast %3 : vector<1x8x512xf32> to vector<8x512xf32>
    %c0_3 = arith.constant 0 : index
    %c0_4 = arith.constant 0 : index
    %c0_5 = arith.constant 0 : index
    %5 = vector.load %arg4[%c0_3, %c0_4, %c0_5] : memref<1x1x512xi32, #tpu.memory_space<vmem>>, vector<1x1x512xi32>
    %6 = vector.shape_cast %5 : vector<1x1x512xi32> to vector<1x512xi32>
    %cst = arith.constant dense<0xFF800000> : vector<512xf32>
    %7 = vector.multi_reduction <maximumf>, %4, %cst [0] : vector<8x512xf32> to vector<512xf32>
    %8 = vector.shape_cast %7 : vector<512xf32> to vector<1x512xf32>
    %9 = vector.broadcast %8 : vector<1x512xf32> to vector<8x512xf32>
    %10 = arith.subf %4, %9 : vector<8x512xf32>
    %11 = math.exp %10 : vector<8x512xf32>
    %cst_6 = arith.constant dense<0.000000e+00> : vector<512xf32>
    %12 = vector.multi_reduction <add>, %11, %cst_6 [0] : vector<8x512xf32> to vector<512xf32>
    %13 = vector.shape_cast %12 : vector<512xf32> to vector<1x512xf32>
    %c0_i32_7 = arith.constant 0 : i32
    %14 = vector.broadcast %c0_i32_7 : i32 to vector<1x512xi32>
    %15 = arith.cmpi slt, %6, %14 : vector<1x512xi32>
    %c0_i32_8 = arith.constant 0 : i32
    %16 = vector.broadcast %c0_i32_8 : i32 to vector<1x512xi32>
    %17 = arith.select %15, %16, %6 : vector<1x512xi1>, vector<1x512xi32>
    %18 = tpu.iota {dimensions = array<i32: 0>} : vector<8x512xi32>
    %19 = vector.broadcast %17 : vector<1x512xi32> to vector<8x512xi32>
    %20 = arith.cmpi eq, %18, %19 : vector<8x512xi32>
    %cst_9 = arith.constant 0.000000e+00 : f32
    %21 = vector.broadcast %cst_9 : f32 to vector<8x512xf32>
    %22 = arith.select %20, %4, %21 : vector<8x512xi1>, vector<8x512xf32>
    %cst_10 = arith.constant dense<0.000000e+00> : vector<512xf32>
    %23 = vector.multi_reduction <add>, %22, %cst_10 [0] : vector<8x512xf32> to vector<512xf32>
    %24 = vector.shape_cast %23 : vector<512xf32> to vector<1x512xf32>
    %25 = math.log %13 : vector<1x512xf32>
    %26 = arith.addf %25, %8 : vector<1x512xf32>
    %27 = arith.subf %26, %24 : vector<1x512xf32>
    %c0_i32_11 = arith.constant 0 : i32
    %28 = vector.broadcast %c0_i32_11 : i32 to vector<1x512xi32>
    %29 = arith.cmpi sgt, %6, %28 : vector<1x512xi32>
    %30 = arith.extui %29 : vector<1x512xi1> to vector<1x512xi32>
    %31 = arith.sitofp %30 : vector<1x512xi32> to vector<1x512xf32>
    %c0_i32_12 = arith.constant 0 : i32
    %32 = vector.broadcast %c0_i32_12 : i32 to vector<1x512xi32>
    %33 = arith.cmpi eq, %6, %32 : vector<1x512xi32>
    %34 = arith.extui %33 : vector<1x512xi1> to vector<1x512xi32>
    %35 = arith.sitofp %34 : vector<1x512xi32> to vector<1x512xf32>
    %36 = arith.mulf %27, %35 : vector<1x512xf32>
    %37 = vector.shape_cast %36 : vector<1x512xf32> to vector<1x1x512xf32>
    %c0_13 = arith.constant 0 : index
    %c0_14 = arith.constant 0 : index
    %c0_15 = arith.constant 0 : index
    %38 = vector.load %arg6[%c0_13, %c0_14, %c0_15] : memref<1x1x512xf32, #tpu.memory_space<vmem>>, vector<1x1x512xf32>
    tpu.vector_store %arg6[%c0_13, %c0_14, %c0_15], %37 {strides = array<i32>} : memref<1x1x512xf32, #tpu.memory_space<vmem>>, vector<1x1x512xf32>,
    %c0_16 = arith.constant 0 : index
    %c0_17 = arith.constant 0 : index
    %c0_18 = arith.constant 0 : index
    %39 = vector.load %arg3[%c0_16, %c0_17, %c0_18] : memref<1x4x512xf32, #tpu.memory_space<vmem>>, vector<1x4x512xf32>
    %40 = vector.shape_cast %39 : vector<1x4x512xf32> to vector<4x512xf32>
    %c0_19 = arith.constant 0 : index
    %c0_20 = arith.constant 0 : index
    %c0_21 = arith.constant 0 : index
    %41 = vector.load %arg5[%c0_19, %c0_20, %c0_21] : memref<1x4x512xf32, #tpu.memory_space<vmem>>, vector<1x4x512xf32>
    %42 = vector.shape_cast %41 : vector<1x4x512xf32> to vector<4x512xf32>
    %43 = arith.subf %40, %42 : vector<4x512xf32>
    %44 = math.absf %43 : vector<4x512xf32>
    %cst_22 = arith.constant 1.000000e+00 : f32
    %45 = vector.broadcast %cst_22 : f32 to vector<4x512xf32>
    %46 = arith.cmpf olt, %44, %45 : vector<4x512xf32>
    %cst_23 = arith.constant 5.000000e-01 : f32
    %47 = vector.broadcast %cst_23 : f32 to vector<4x512xf32>
    %48 = arith.mulf %47, %43 : vector<4x512xf32>
    %49 = arith.mulf %48, %43 : vector<4x512xf32>
    %cst_24 = arith.constant 5.000000e-01 : f32
    %50 = vector.broadcast %cst_24 : f32 to vector<4x512xf32>
    %51 = arith.subf %44, %50 : vector<4x512xf32>
    %52 = arith.select %46, %49, %51 : vector<4x512xi1>, vector<4x512xf32>
    %53 = vector.broadcast %31 : vector<1x512xf32> to vector<4x512xf32>
    %54 = arith.mulf %52, %53 : vector<4x512xf32>
    %c0_25 = arith.constant 0 : index
    %c0_26 = arith.constant 0 : index
    %55 = vector.load %arg8[%c0_25, %c0_26] : memref<1x512xf32, #tpu.memory_space<vmem>>, vector<1x512xf32>
    %56 = arith.mulf %27, %31 : vector<1x512xf32>
    %57 = arith.addf %55, %56 : vector<1x512xf32>
    %c0_27 = arith.constant 0 : index
    %c0_28 = arith.constant 0 : index
    %58 = vector.load %arg8[%c0_27, %c0_28] : memref<1x512xf32, #tpu.memory_space<vmem>>, vector<1x512xf32>
    tpu.vector_store %arg8[%c0_27, %c0_28], %57 {strides = array<i32>} : memref<1x512xf32, #tpu.memory_space<vmem>>, vector<1x512xf32>,
    %c0_29 = arith.constant 0 : index
    %c0_30 = arith.constant 0 : index
    %59 = vector.load %arg9[%c0_29, %c0_30] : memref<1x512xf32, #tpu.memory_space<vmem>>, vector<1x512xf32>
    %60 = arith.addf %59, %31 : vector<1x512xf32>
    %c0_31 = arith.constant 0 : index
    %c0_32 = arith.constant 0 : index
    %61 = vector.load %arg9[%c0_31, %c0_32] : memref<1x512xf32, #tpu.memory_space<vmem>>, vector<1x512xf32>
    tpu.vector_store %arg9[%c0_31, %c0_32], %60 {strides = array<i32>} : memref<1x512xf32, #tpu.memory_space<vmem>>, vector<1x512xf32>,
    %c0_33 = arith.constant 0 : index
    %c0_34 = arith.constant 0 : index
    %62 = vector.load %arg10[%c0_33, %c0_34] : memref<1x512xf32, #tpu.memory_space<vmem>>, vector<1x512xf32>
    %63 = arith.addf %62, %35 : vector<1x512xf32>
    %c0_35 = arith.constant 0 : index
    %c0_36 = arith.constant 0 : index
    %64 = vector.load %arg10[%c0_35, %c0_36] : memref<1x512xf32, #tpu.memory_space<vmem>>, vector<1x512xf32>
    tpu.vector_store %arg10[%c0_35, %c0_36], %63 {strides = array<i32>} : memref<1x512xf32, #tpu.memory_space<vmem>>, vector<1x512xf32>,
    %c0_37 = arith.constant 0 : index
    %c0_38 = arith.constant 0 : index
    %65 = vector.load %arg11[%c0_37, %c0_38] : memref<4x512xf32, #tpu.memory_space<vmem>>, vector<4x512xf32>
    %66 = arith.addf %65, %54 : vector<4x512xf32>
    %c0_39 = arith.constant 0 : index
    %c0_40 = arith.constant 0 : index
    %67 = vector.load %arg11[%c0_39, %c0_40] : memref<4x512xf32, #tpu.memory_space<vmem>>, vector<4x512xf32>
    tpu.vector_store %arg11[%c0_39, %c0_40], %66 {strides = array<i32>} : memref<4x512xf32, #tpu.memory_space<vmem>>, vector<4x512xf32>,
    %c0_i32_41 = arith.constant 0 : i32
    %68 = arith.cmpi eq, %arg1, %c0_i32_41 : i32
    %69 = arith.extui %68 : i1 to i32
    %c0_i32_42 = arith.constant 0 : i32
    %70 = arith.cmpi ne, %69, %c0_i32_42 : i32
    scf.if %70 {
      %c0_43 = arith.constant 0 : index
      %c0_44 = arith.constant 0 : index
      %71 = vector.load %arg8[%c0_43, %c0_44] : memref<1x512xf32, #tpu.memory_space<vmem>>, vector<1x512xf32>
      %72 = vector.shape_cast %71 : vector<1x512xf32> to vector<1x1x512xf32>
      %cst_45 = arith.constant dense<0.000000e+00> : vector<1xf32>
      %73 = vector.multi_reduction <add>, %72, %cst_45 [1, 2] : vector<1x1x512xf32> to vector<1xf32>
      %74 = vector.shape_cast %73 : vector<1xf32> to vector<1x1x1xf32>
      %75 = vector.extract %74[0, 0, 0] : f32 from vector<1x1x1xf32>
      %c0_46 = arith.constant 0 : index
      %c0_47 = arith.constant 0 : index
      %76 = vector.load %arg9[%c0_46, %c0_47] : memref<1x512xf32, #tpu.memory_space<vmem>>, vector<1x512xf32>
      %77 = vector.shape_cast %76 : vector<1x512xf32> to vector<1x1x512xf32>
      %cst_48 = arith.constant dense<0.000000e+00> : vector<1xf32>
      %78 = vector.multi_reduction <add>, %77, %cst_48 [1, 2] : vector<1x1x512xf32> to vector<1xf32>
      %79 = vector.shape_cast %78 : vector<1xf32> to vector<1x1x1xf32>
      %80 = vector.extract %79[0, 0, 0] : f32 from vector<1x1x1xf32>
      %c0_49 = arith.constant 0 : index
      %c0_50 = arith.constant 0 : index
      %81 = vector.load %arg10[%c0_49, %c0_50] : memref<1x512xf32, #tpu.memory_space<vmem>>, vector<1x512xf32>
      %82 = vector.shape_cast %81 : vector<1x512xf32> to vector<1x1x512xf32>
      %cst_51 = arith.constant dense<0.000000e+00> : vector<1xf32>
      %83 = vector.multi_reduction <add>, %82, %cst_51 [1, 2] : vector<1x1x512xf32> to vector<1xf32>
      %84 = vector.shape_cast %83 : vector<1xf32> to vector<1x1x1xf32>
      %85 = vector.extract %84[0, 0, 0] : f32 from vector<1x1x1xf32>
      %c0_52 = arith.constant 0 : index
      %c0_53 = arith.constant 0 : index
      %86 = vector.load %arg11[%c0_52, %c0_53] : memref<4x512xf32, #tpu.memory_space<vmem>>, vector<4x512xf32>
      %87 = vector.shape_cast %86 : vector<4x512xf32> to vector<1x4x512xf32>
      %cst_54 = arith.constant dense<0.000000e+00> : vector<1xf32>
      %88 = vector.multi_reduction <add>, %87, %cst_54 [1, 2] : vector<1x4x512xf32> to vector<1xf32>
      %89 = vector.shape_cast %88 : vector<1xf32> to vector<1x1x1xf32>
      %90 = vector.extract %89[0, 0, 0] : f32 from vector<1x1x1xf32>
      %91 = tpu.iota {dimensions = array<i32: 2>} : vector<1x1x128xi32>
      %c0_i32_55 = arith.constant 0 : i32
      %92 = vector.broadcast %c0_i32_55 : i32 to vector<1x1x128xi32>
      %93 = arith.cmpi eq, %91, %92 : vector<1x1x128xi32>
      %cst_56 = arith.constant 0.000000e+00 : f32
      %94 = vector.broadcast %75 : f32 to vector<1x1x128xf32>
      %95 = vector.broadcast %cst_56 : f32 to vector<1x1x128xf32>
      %96 = arith.select %93, %94, %95 : vector<1x1x128xi1>, vector<1x1x128xf32>
      %c1_i32 = arith.constant 1 : i32
      %97 = vector.broadcast %c1_i32 : i32 to vector<1x1x128xi32>
      %98 = arith.cmpi eq, %91, %97 : vector<1x1x128xi32>
      %cst_57 = arith.constant 0.000000e+00 : f32
      %99 = vector.broadcast %80 : f32 to vector<1x1x128xf32>
      %100 = vector.broadcast %cst_57 : f32 to vector<1x1x128xf32>
      %101 = arith.select %98, %99, %100 : vector<1x1x128xi1>, vector<1x1x128xf32>
      %102 = arith.addf %96, %101 : vector<1x1x128xf32>
      %c2_i32 = arith.constant 2 : i32
      %103 = vector.broadcast %c2_i32 : i32 to vector<1x1x128xi32>
      %104 = arith.cmpi eq, %91, %103 : vector<1x1x128xi32>
      %cst_58 = arith.constant 0.000000e+00 : f32
      %105 = vector.broadcast %85 : f32 to vector<1x1x128xf32>
      %106 = vector.broadcast %cst_58 : f32 to vector<1x1x128xf32>
      %107 = arith.select %104, %105, %106 : vector<1x1x128xi1>, vector<1x1x128xf32>
      %108 = arith.addf %102, %107 : vector<1x1x128xf32>
      %c3_i32 = arith.constant 3 : i32
      %109 = vector.broadcast %c3_i32 : i32 to vector<1x1x128xi32>
      %110 = arith.cmpi eq, %91, %109 : vector<1x1x128xi32>
      %cst_59 = arith.constant 0.000000e+00 : f32
      %111 = vector.broadcast %90 : f32 to vector<1x1x128xf32>
      %112 = vector.broadcast %cst_59 : f32 to vector<1x1x128xf32>
      %113 = arith.select %110, %111, %112 : vector<1x1x128xi1>, vector<1x1x128xf32>
      %114 = arith.addf %108, %113 : vector<1x1x128xf32>
      %c0_60 = arith.constant 0 : index
      %c0_61 = arith.constant 0 : index
      %c0_62 = arith.constant 0 : index
      %115 = vector.load %arg7[%c0_60, %c0_61, %c0_62] : memref<1x1x128xf32, #tpu.memory_space<vmem>>, vector<1x1x128xf32>
      tpu.vector_store %arg7[%c0_60, %c0_61, %c0_62], %114 {strides = array<i32>} : memref<1x1x128xf32, #tpu.memory_space<vmem>>, vector<1x1x128xf32>,
    } else {
    }
    return
  }
  func.func @transform_0(%arg0: i32, %arg1: i32) -> (i32, i32, i32) {
    %c0_i32 = arith.constant 0 : i32
    %c0_i32_0 = arith.constant 0 : i32
    return %arg0, %c0_i32, %arg1 : i32, i32, i32
  }
  func.func @transform_1(%arg0: i32, %arg1: i32) -> (i32, i32, i32) {
    %c0_i32 = arith.constant 0 : i32
    %c0_i32_0 = arith.constant 0 : i32
    return %arg0, %c0_i32, %arg1 : i32, i32, i32
  }
  func.func @transform_2(%arg0: i32, %arg1: i32) -> (i32, i32, i32) {
    %c0_i32 = arith.constant 0 : i32
    %c0_i32_0 = arith.constant 0 : i32
    return %arg0, %c0_i32, %arg1 : i32, i32, i32
  }
  func.func @transform_3(%arg0: i32, %arg1: i32) -> (i32, i32, i32) {
    %c0_i32 = arith.constant 0 : i32
    %c0_i32_0 = arith.constant 0 : i32
    return %arg0, %c0_i32, %arg1 : i32, i32, i32
  }
  func.func @transform_4(%arg0: i32, %arg1: i32) -> (i32, i32, i32) {
    %c0_i32 = arith.constant 0 : i32
    %c0_i32_0 = arith.constant 0 : i32
    return %arg0, %c0_i32, %arg1 : i32, i32, i32
  }
  func.func @transform_5(%arg0: i32, %arg1: i32) -> (i32, i32, i32) {
    %c0_i32 = arith.constant 0 : i32
    %c0_i32_0 = arith.constant 0 : i32
    %c0_i32_1 = arith.constant 0 : i32
    return %arg0, %c0_i32, %c0_i32_0 : i32, i32, i32
  }
}

</mosaic_0001>

<llo_original>
// kernel: tpu_custom_call.1
$region0: #{tpu_custom_call.1}
  #allocation0 [shape = 'u32[]', space=smem, size = 0x4, offset = 0x4, fixed_abs, tag = 'smem constant byte address 0x4 - core index']
  #allocation1 [shape = 'u32[144,128]{1,0:T(1,128)}', space=vmem, size = 0x12000, scoped, tag = 'internal scratch']
  #allocation2 [shape = 'f32[1,512]{1,0:T(1,128)}', space=vmem, size = 0x800, scoped, tag = 'scratch operand']
  #allocation3 [shape = 'f32[1,512]{1,0:T(1,128)}', space=vmem, size = 0x800, scoped, tag = 'scratch operand']
  #allocation4 [shape = 'f32[1,512]{1,0:T(1,128)}', space=vmem, size = 0x800, scoped, tag = 'scratch operand']
  #allocation5 [shape = 'f32[4,512]{1,0:T(4,128)}', space=vmem, size = 0x2000, scoped, tag = 'scratch operand']
  %s0 = inlined_call_operand.hbm [shape: f32[2,8,512], index: 0, kind: input, shape index: {}]
  %s1 = inlined_call_operand.hbm [shape: f32[2,4,512], index: 1, kind: input, shape index: {}]
  %s2 = inlined_call_operand.hbm [shape: s32[2,1,512], index: 2, kind: input, shape index: {}]
  %s3 = inlined_call_operand.hbm [shape: f32[2,4,512], index: 3, kind: input, shape index: {}]
  %s4 = inlined_call_operand.hbm [shape: f32[2,1,512], index: 4, kind: output, shape index: {0}]
  %s5 = inlined_call_operand.hbm [shape: f32[2,1,128], index: 5, kind: output, shape index: {1}]
  %6 = xla_tuple %s4, %s5
  %s7 = sld [smem:[#allocation0]]
  $region81: #{tpu_custom_call.1} parent=0
    _
  %s9 = ssub.s32 1, %s7
  %s10 = scalar_select 0, %s9, %s7
  $region1: #{tpu_custom_call.1} parent=0
    #allocation6 [shape = 'u8[32768]{0}', space=vmem, size = 0x8000, scoped, tag = 'input window, operand 0']
    #allocation7 [shape = 's32[2]{0}', space=sflag, size = 0x8, scoped, tag = 'scoped memory for tpu_custom_call.1']
    #allocation8 [shape = 's32[2]{0}', space=sflag, size = 0x8, scoped, tag = 'scoped memory for tpu_custom_call.1']
    #allocation9 [shape = 'u8[16384]{0}', space=vmem, size = 0x4000, scoped, tag = 'input window, operand 1']
    #allocation10 [shape = 's32[2]{0}', space=sflag, size = 0x8, scoped, tag = 'scoped memory for tpu_custom_call.1']
    #allocation11 [shape = 'u8[4096]{0}', space=vmem, size = 0x1000, scoped, tag = 'input window, operand 2']
    #allocation12 [shape = 'u8[16384]{0}', space=vmem, size = 0x4000, scoped, tag = 'input window, operand 3']
    #allocation13 [shape = 's32[2]{0}', space=sflag, size = 0x8, scoped, tag = 'scoped memory for tpu_custom_call.1']
    #allocation14 [shape = 'u8[4096]{0}', space=vmem, size = 0x1000, scoped, tag = 'output window, operand 0']
    #allocation15 [shape = 'u8[1024]{0}', space=vmem, size = 0x400, scoped, tag = 'output window, operand 1']
    #allocation16 [shape = 's32[2]{0}', space=sflag, size = 0x8, scoped, tag = 'scoped memory for tpu_custom_call.1']
    %11 = vsyncpa [#allocation7], 0
    %s12 = scalar_lea.sflag [#allocation7], 1
    %13 = vsyncpa %s12, 0
    %14 = vsyncpa [#allocation10], 0
    %s15 = scalar_lea.sflag [#allocation10], 1
    %16 = vsyncpa %s15, 0
    %17 = vsyncpa [#allocation13], 0
    %s18 = scalar_lea.sflag [#allocation13], 1
    %19 = vsyncpa %s18, 0
    %20 = vsyncpa [#allocation8], 0
    %s21 = scalar_lea.sflag [#allocation8], 1
    %22 = vsyncpa %s21, 0
    %23 = vsyncpa [#allocation16], 0
    %s24 = scalar_lea.sflag [#allocation16], 1
    %25 = vsyncpa %s24, 0
    loop: start=0, step=1, limit=4
    $region2: #{tpu_custom_call.1} parent=1 // loop_pre_header
      _
    $region3: #{tpu_custom_call.1} parent=1 // loop_header
      %s27 = sphi 0, %s31
      %p28 = scmp.ge.s32.totalorder %s27, 4
      %s34 = sphi 0, %s46
      %s35 = sphi 0, %s42
      %s36 = sphi 0, %s34
      %s37 = sphi 0, %s35
      %s38 = sphi 0, %s36
      %s39 = sphi 0, %s37
      %s51 = sphi 0, %s53
      %s54 = sphi 0, %s51
      %s55 = sphi 0, %s54
      %s71 = sphi 0, %s55
      %s79 = sphi 0, %s81
      %s82 = sphi 0, %s79
      %s83 = sphi 0, %s82
      %s99 = sphi 0, %s83
      %s107 = sphi 0, %s109
      %s110 = sphi 0, %s107
      %s111 = sphi 0, %s110
      %s127 = sphi 0, %s111
      %s135 = sphi 0, %s137
      %s138 = sphi 0, %s135
      %s139 = sphi 0, %s138
      %s155 = sphi 0, %s139
      %s163 = sphi 0, %s165
      %s166 = sphi 0, %s163
      %s167 = sphi 0, %s166
      %s183 = sphi 0, %s167
      %s189 = sphi 0, %s191
      %s192 = sphi 0, %s189
      %s193 = sphi 0, %s192
      %s209 = sphi 0, %s193
    $region4: #{tpu_custom_call.1} parent=1 // loop_header_branch
      %30 = sbr.rel (%p28) target = $region8
    $region5: #{tpu_custom_call.1} parent=1 // loop_body
      %s32 = ssub.s32 %s27, 1
      %s33 = ssub.s32 %s27, 2
      %s40 = sadd.s32 1, %s35
      %p41 = scmp.ge.s32.totalorder %s40, 1
      %s42 = scalar_select %p41, 0, %s40
      %s43 = sadd.s32 1, %s34
      %s44 = scalar_select %p41, %s43, %s34
      %p45 = scmp.ge.s32.totalorder %s44, 2
      %s46 = scalar_select %p45, 0, %s44
      %s47 = ssub.s32 %s34, %s46
      %s48 = ssub.s32 %s35, %s42
      %s49 = sor.u32 %s47, %s48
      %p50 = scmp.eq.s32.totalorder %s49, 0
      %s52 = sadd.s32 %s51, 1
      %s53 = scalar_select %p50, %s51, %s52
      %p56 = pneg %p50
      %p57 = scmp.eq.s32.totalorder %s27, 1
      %p58 = por %p56, %p57
      %p59 = scmp.ne.s32.totalorder %s51, %s54
      %p60 = scmp.eq.s32.totalorder %s27, 0
      %p61 = por %p59, %p60
      %p62 = scmp.ne.s32.totalorder %s51, %s54
      %p63 = scmp.eq.s32.totalorder %s32, 1
      %p64 = por %p62, %p63
      %p65 = scmp.ne.s32.totalorder %s54, %s55
      %p66 = scmp.eq.s32.totalorder %s32, 0
      %p67 = por %p65, %p66
      %p68 = scmp.ne.s32.totalorder %s54, %s55
      %p69 = scmp.eq.s32.totalorder %s33, 1
      %p70 = por %p68, %p69
      %p72 = scmp.ne.s32.totalorder %s55, %s71
      %p73 = scmp.eq.s32.totalorder %s33, 0
      %p74 = por %p72, %p73
      %s75 = ssub.s32 %s34, %s46
      %s76 = ssub.s32 %s35, %s42
      %s77 = sor.u32 %s75, %s76
      %p78 = scmp.eq.s32.totalorder %s77, 0
      %s80 = sadd.s32 %s79, 1
      %s81 = scalar_select %p78, %s79, %s80
      %p84 = pneg %p78
      %p85 = scmp.eq.s32.totalorder %s27, 1
      %p86 = por %p84, %p85
      %p87 = scmp.ne.s32.totalorder %s79, %s82
      %p88 = scmp.eq.s32.totalorder %s27, 0
      %p89 = por %p87, %p88
      %p90 = scmp.ne.s32.totalorder %s79, %s82
      %p91 = scmp.eq.s32.totalorder %s32, 1
      %p92 = por %p90, %p91
      %p93 = scmp.ne.s32.totalorder %s82, %s83
      %p94 = scmp.eq.s32.totalorder %s32, 0
      %p95 = por %p93, %p94
      %p96 = scmp.ne.s32.totalorder %s82, %s83
      %p97 = scmp.eq.s32.totalorder %s33, 1
      %p98 = por %p96, %p97
      %p100 = scmp.ne.s32.totalorder %s83, %s99
      %p101 = scmp.eq.s32.totalorder %s33, 0
      %p102 = por %p100, %p101
      %s103 = ssub.s32 %s34, %s46
      %s104 = ssub.s32 %s35, %s42
      %s105 = sor.u32 %s103, %s104
      %p106 = scmp.eq.s32.totalorder %s105, 0
      %s108 = sadd.s32 %s107, 1
      %s109 = scalar_select %p106, %s107, %s108
      %p112 = pneg %p106
      %p113 = scmp.eq.s32.totalorder %s27, 1
      %p114 = por %p112, %p113
      %p115 = scmp.ne.s32.totalorder %s107, %s110
      %p116 = scmp.eq.s32.totalorder %s27, 0
      %p117 = por %p115, %p116
      %p118 = scmp.ne.s32.totalorder %s107, %s110
      %p119 = scmp.eq.s32.totalorder %s32, 1
      %p120 = por %p118, %p119
      %p121 = scmp.ne.s32.totalorder %s110, %s111
      %p122 = scmp.eq.s32.totalorder %s32, 0
      %p123 = por %p121, %p122
      %p124 = scmp.ne.s32.totalorder %s110, %s111
      %p125 = scmp.eq.s32.totalorder %s33, 1
      %p126 = por %p124, %p125
      %p128 = scmp.ne.s32.totalorder %s111, %s127
      %p129 = scmp.eq.s32.totalorder %s33, 0
      %p130 = por %p128, %p129
      %s131 = ssub.s32 %s34, %s46
      %s132 = ssub.s32 %s35, %s42
      %s133 = sor.u32 %s131, %s132
      %p134 = scmp.eq.s32.totalorder %s133, 0
      %s136 = sadd.s32 %s135, 1
      %s137 = scalar_select %p134, %s135, %s136
      %p140 = pneg %p134
      %p141 = scmp.eq.s32.totalorder %s27, 1
      %p142 = por %p140, %p141
      %p143 = scmp.ne.s32.totalorder %s135, %s138
      %p144 = scmp.eq.s32.totalorder %s27, 0
      %p145 = por %p143, %p144
      %p146 = scmp.ne.s32.totalorder %s135, %s138
      %p147 = scmp.eq.s32.totalorder %s32, 1
      %p148 = por %p146, %p147
      %p149 = scmp.ne.s32.totalorder %s138, %s139
      %p150 = scmp.eq.s32.totalorder %s32, 0
      %p151 = por %p149, %p150
      %p152 = scmp.ne.s32.totalorder %s138, %s139
      %p153 = scmp.eq.s32.totalorder %s33, 1
      %p154 = por %p152, %p153
      %p156 = scmp.ne.s32.totalorder %s139, %s155
      %p157 = scmp.eq.s32.totalorder %s33, 0
      %p158 = por %p156, %p157
      %s159 = ssub.s32 %s34, %s46
      %s160 = ssub.s32 %s35, %s42
      %s161 = sor.u32 %s159, %s160
      %p162 = scmp.eq.s32.totalorder %s161, 0
      %s164 = sadd.s32 %s163, 1
      %s165 = scalar_select %p162, %s163, %s164
      %p168 = pneg %p162
      %p169 = scmp.eq.s32.totalorder %s27, 1
      %p170 = por %p168, %p169
      %p171 = scmp.ne.s32.totalorder %s163, %s166
      %p172 = scmp.eq.s32.totalorder %s27, 0
      %p173 = por %p171, %p172
      %p174 = scmp.ne.s32.totalorder %s163, %s166
      %p175 = scmp.eq.s32.totalorder %s32, 1
      %p176 = por %p174, %p175
      %p177 = scmp.ne.s32.totalorder %s166, %s167
      %p178 = scmp.eq.s32.totalorder %s32, 0
      %p179 = por %p177, %p178
      %p180 = scmp.ne.s32.totalorder %s166, %s167
      %p181 = scmp.eq.s32.totalorder %s33, 1
      %p182 = por %p180, %p181
      %p184 = scmp.ne.s32.totalorder %s167, %s183
      %p185 = scmp.eq.s32.totalorder %s33, 0
      %p186 = por %p184, %p185
      %s187 = ssub.s32 %s34, %s46
      %p188 = scmp.eq.s32.totalorder %s187, 0
      %s190 = sadd.s32 %s189, 1
      %s191 = scalar_select %p188, %s189, %s190
      %p194 = pneg %p188
      %p195 = scmp.eq.s32.totalorder %s27, 1
      %p196 = por %p194, %p195
      %p197 = scmp.ne.s32.totalorder %s189, %s192
      %p198 = scmp.eq.s32.totalorder %s27, 0
      %p199 = por %p197, %p198
      %p200 = scmp.ne.s32.totalorder %s189, %s192
      %p201 = scmp.eq.s32.totalorder %s32, 1
      %p202 = por %p200, %p201
      %p203 = scmp.ne.s32.totalorder %s192, %s193
      %p204 = scmp.eq.s32.totalorder %s32, 0
      %p205 = por %p203, %p204
      %p206 = scmp.ne.s32.totalorder %s192, %s193
      %p207 = scmp.eq.s32.totalorder %s33, 1
      %p208 = por %p206, %p207
      %p210 = scmp.ne.s32.totalorder %s193, %s209
      %p211 = scmp.eq.s32.totalorder %s33, 0
      %p212 = por %p210, %p211
      %p213 = scmp.le.s32.totalorder 1, %s27
      %p214 = scmp.lt.s32.totalorder %s27, 3
      %p215 = pnand %p213, %p214
      %p216 = pneg %p215
      // Predicated region
      $region9: #{tpu_custom_call.1} parent=5 // pred_check
        _
      $region10: #{tpu_custom_call.1} parent=5 // pred_check_branch
        %218 = sbr.rel (%p215) target = $region12
      $region11: #{tpu_custom_call.1} parent=5 // pred_region
        %s219 = ssub.s32 %s27, 1
      $region12: #{tpu_custom_call.1} parent=5 // pred_fallthru
        _
      %p220 = scmp.lt.s32.totalorder %s27, 2
      // Predicated region
      $region13: #{tpu_custom_call.1} parent=5 // pred_check
        %p221 = pneg %p220
      $region14: #{tpu_custom_call.1} parent=5 // pred_check_branch
        %223 = sbr.rel (%p221) target = $region16
      $region15: #{tpu_custom_call.1} parent=5 // pred_region
        // Predicated region
        $region17: #{tpu_custom_call.1} parent=15 // pred_check
          %p224 = pneg %p61
        $region18: #{tpu_custom_call.1} parent=15 // pred_check_branch
          %226 = sbr.rel (%p224) target = $region20
        $region19: #{tpu_custom_call.1} parent=15 // pred_region
          %s227 = sand.u32 %s51, 1
          %s228 = scalar_lea.sflag [#allocation7], %s227
          %s229 = sand.u32 %s51, 1
          %s230 = smul.addr %s229, 32
          %s231 = scalar_lea.vmem [#allocation6], %s230
          %s232 = smul.u32 4, %s35
          %s234 = ssub.s32 512, 512
          %235 = vsyncadd %s228, %s234
          %s236 = smul.addr %s34, 4
          %s237 = sadd.s32 %s232, %s236
          %s238 = smul.addr %s237, 128
          %s239 = scalar_lea.hbm %s0, %s238
          %s241 = sshll.u32 %s231, 4
          %s242 = int_to_ptr.vmem [resolvable:$true] %s241
          %244 = dma.hbm_to_vmem [thread:$0]  %s239, 512, %s242, %s228
        $region20: #{tpu_custom_call.1} parent=15 // pred_fallthru
          _
        // Predicated region
        $region21: #{tpu_custom_call.1} parent=15 // pred_check
          %p245 = pneg %p89
        $region22: #{tpu_custom_call.1} parent=15 // pred_check_branch
          %247 = sbr.rel (%p245) target = $region24
        $region23: #{tpu_custom_call.1} parent=15 // pred_region
          %s248 = sand.u32 %s27, 1
          %s249 = scalar_lea.sflag [#allocation10], %s248
          %s250 = sand.u32 %s79, 1
          %s251 = smul.addr %s250, 16
          %s252 = scalar_lea.vmem [#allocation9], %s251
          %s253 = smul.u32 4, %s35
          %s255 = ssub.s32 256, 256
          %256 = vsyncadd %s249, %s255
          %s257 = smul.addr %s34, 4
          %s258 = sadd.s32 %s253, %s257
          %s259 = smul.addr %s258, 64
          %s260 = scalar_lea.hbm %s1, %s259
          %s262 = sshll.u32 %s252, 4
          %s263 = int_to_ptr.vmem [resolvable:$true] %s262
          %265 = dma.hbm_to_vmem [thread:$0]  %s260, 256, %s263, %s249
        $region24: #{tpu_custom_call.1} parent=15 // pred_fallthru
          _
        // Predicated region
        $region25: #{tpu_custom_call.1} parent=15 // pred_check
          %p266 = pneg %p117
        $region26: #{tpu_custom_call.1} parent=15 // pred_check_branch
          %268 = sbr.rel (%p266) target = $region28
        $region27: #{tpu_custom_call.1} parent=15 // pred_region
          %s269 = sand.u32 %s27, 1
          %s270 = scalar_lea.sflag [#allocation10], %s269
          %s271 = sand.u32 %s107, 1
          %s272 = smul.addr %s271, 4
          %s273 = scalar_lea.vmem [#allocation11], %s272
          %s274 = smul.u32 4, %s35
          %s276 = ssub.s32 64, 64
          %277 = vsyncadd %s270, %s276
          %s278 = smul.addr %s34, 4
          %s279 = sadd.s32 %s274, %s278
          %s280 = smul.addr %s279, 16
          %s281 = scalar_lea.hbm %s2, %s280
          %s283 = sshll.u32 %s273, 4
          %s284 = int_to_ptr.vmem [resolvable:$true] %s283
          %286 = dma.hbm_to_vmem [thread:$0]  %s281, 64, %s284, %s270
        $region28: #{tpu_custom_call.1} parent=15 // pred_fallthru
          _
        // Predicated region
        $region29: #{tpu_custom_call.1} parent=15 // pred_check
          %p287 = pneg %p145
        $region30: #{tpu_custom_call.1} parent=15 // pred_check_branch
          %289 = sbr.rel (%p287) target = $region32
        $region31: #{tpu_custom_call.1} parent=15 // pred_region
          %s290 = sand.u32 %s135, 1
          %s291 = scalar_lea.sflag [#allocation13], %s290
          %s292 = sand.u32 %s135, 1
          %s293 = smul.addr %s292, 16
          %s294 = scalar_lea.vmem [#allocation12], %s293
          %s295 = smul.u32 4, %s35
          %s297 = ssub.s32 256, 256
          %298 = vsyncadd %s291, %s297
          %s299 = smul.addr %s34, 4
          %s300 = sadd.s32 %s295, %s299
          %s301 = smul.addr %s300, 64
          %s302 = scalar_lea.hbm %s3, %s301
          %s304 = sshll.u32 %s294, 4
          %s305 = int_to_ptr.vmem [resolvable:$true] %s304
          %307 = dma.hbm_to_vmem [thread:$0]  %s302, 256, %s305, %s291
        $region32: #{tpu_custom_call.1} parent=15 // pred_fallthru
          _
      $region16: #{tpu_custom_call.1} parent=5 // pred_fallthru
        _
      %p308 = scmp.le.s32.totalorder 1, %s27
      %p309 = scmp.lt.s32.totalorder %s27, 3
      %p310 = pnand %p308, %p309
      %p311 = pneg %p310
      // Predicated region
      $region33: #{tpu_custom_call.1} parent=5 // pred_check
        _
      $region34: #{tpu_custom_call.1} parent=5 // pred_check_branch
        %313 = sbr.rel (%p310) target = $region36
      $region35: #{tpu_custom_call.1} parent=5 // pred_region
        %s314 = ssub.s32 %s27, 1
        %s315 = sand.u32 %s54, 1
        %s316 = scalar_lea.sflag [#allocation7], %s315
        %s317 = sand.u32 %s54, 1
        %s318 = smul.addr %s317, 32
        %s319 = scalar_lea.vmem [#allocation6], %s318
        // Predicated region
        $region37: #{tpu_custom_call.1} parent=35 // pred_check
          %p320 = pneg %p67
        $region38: #{tpu_custom_call.1} parent=35 // pred_check_branch
          %322 = sbr.rel (%p320) target = $region40
        $region39: #{tpu_custom_call.1} parent=35 // pred_region
          %323 = dma.done %s316, 512
        $region40: #{tpu_custom_call.1} parent=35 // pred_fallthru
          _
        %s324 = sand.u32 %s32, 1
        %s325 = scalar_lea.sflag [#allocation10], %s324
        %s326 = sand.u32 %s82, 1
        %s327 = smul.addr %s326, 16
        %s328 = scalar_lea.vmem [#allocation9], %s327
        // Predicated region
        $region41: #{tpu_custom_call.1} parent=35 // pred_check
          %p329 = pneg %p95
        $region42: #{tpu_custom_call.1} parent=35 // pred_check_branch
          %331 = sbr.rel (%p329) target = $region44
        $region43: #{tpu_custom_call.1} parent=35 // pred_region
          %332 = dma.done %s325, 256
        $region44: #{tpu_custom_call.1} parent=35 // pred_fallthru
          _
        %s333 = sand.u32 %s32, 1
        %s334 = scalar_lea.sflag [#allocation10], %s333
        %s335 = sand.u32 %s110, 1
        %s336 = smul.addr %s335, 4
        %s337 = scalar_lea.vmem [#allocation11], %s336
        // Predicated region
        $region45: #{tpu_custom_call.1} parent=35 // pred_check
          %p338 = pneg %p123
        $region46: #{tpu_custom_call.1} parent=35 // pred_check_branch
          %340 = sbr.rel (%p338) target = $region48
        $region47: #{tpu_custom_call.1} parent=35 // pred_region
          %341 = dma.done %s334, 64
        $region48: #{tpu_custom_call.1} parent=35 // pred_fallthru
          _
        %s342 = sand.u32 %s138, 1
        %s343 = scalar_lea.sflag [#allocation13], %s342
        %s344 = sand.u32 %s138, 1
        %s345 = smul.addr %s344, 16
        %s346 = scalar_lea.vmem [#allocation12], %s345
        // Predicated region
        $region49: #{tpu_custom_call.1} parent=35 // pred_check
          %p347 = pneg %p151
        $region50: #{tpu_custom_call.1} parent=35 // pred_check_branch
          %349 = sbr.rel (%p347) target = $region52
        $region51: #{tpu_custom_call.1} parent=35 // pred_region
          %350 = dma.done %s343, 256
        $region52: #{tpu_custom_call.1} parent=35 // pred_fallthru
          _
        %s351 = sand.u32 %s54, 1
        %s352 = scalar_lea.sflag [#allocation7], %s351
        %s353 = sand.u32 %s54, 1
        %s354 = smul.addr %s353, 32
        %s355 = scalar_lea.vmem [#allocation6], %s354
        %p356 = pneg %p67
        %p357 = pneg %p64
        %s358 = sand.u32 %s32, 1
        %s359 = scalar_lea.sflag [#allocation10], %s358
        %s360 = sand.u32 %s82, 1
        %s361 = smul.addr %s360, 16
        %s362 = scalar_lea.vmem [#allocation9], %s361
        %p363 = pneg %p95
        %p364 = pneg %p92
        %s365 = sand.u32 %s32, 1
        %s366 = scalar_lea.sflag [#allocation10], %s365
        %s367 = sand.u32 %s110, 1
        %s368 = smul.addr %s367, 4
        %s369 = scalar_lea.vmem [#allocation11], %s368
        %p370 = pneg %p123
        %p371 = pneg %p120
        %s372 = sand.u32 %s138, 1
        %s373 = scalar_lea.sflag [#allocation13], %s372
        %s374 = sand.u32 %s138, 1
        %s375 = smul.addr %s374, 16
        %s376 = scalar_lea.vmem [#allocation12], %s375
        %p377 = pneg %p151
        %p378 = pneg %p148
        %p379 = pneg %p179
        %p380 = pneg %p176
        %s381 = sand.u32 %s166, 1
        %s382 = scalar_lea.sflag [#allocation8], %s381
        %s383 = sand.u32 %s166, 1
        %s384 = smul.addr %s383, 4
        %s385 = scalar_lea.vmem [#allocation14], %s384
        %p386 = pneg %p205
        %p387 = pneg %p202
        %s388 = sand.u32 %s192, 1
        %s389 = scalar_lea.sflag [#allocation16], %s388
        %s390 = sand.u32 %s192, 1
        %s391 = scalar_lea.vmem [#allocation15], %s390
        %s392 = smul.u32 4, %s37
        %s393 = smul.u32 4, %s37
        %s394 = smul.u32 4, %s37
        %s395 = smul.u32 4, %s37
        %s396 = smul.u32 4, %s37
        %p397 = scmp.eq.s32.totalorder %s37, 0
        // Predicated region
        $region53: #{tpu_custom_call.1} parent=35 // pred_check
          %p398 = pneg %p397
        $region54: #{tpu_custom_call.1} parent=35 // pred_check_branch
          %400 = sbr.rel (%p398) target = $region56
        $region55: #{tpu_custom_call.1} parent=35 // pred_region
          %v401 = vlaneseq
          %vm402 = vcmp.ge.s32.totalorder %v401, 0
          %vm403 = vcmp.lt.s32.totalorder %v401, 512
          %vm404 = vmand %vm402, %vm403
          %405 = vst.msk [vmem:[#allocation2] sm:$0xf] %vm404, 0.0
          %406 = vst.msk [vmem:[#allocation3] sm:$0xf] %vm404, 0.0
          %407 = vst.msk [vmem:[#allocation4] sm:$0xf] %vm404, 0.0
          %408 = vst [vmem:[#allocation5] sm:$0xff] 0.0
          %409 = vst [vmem:[#allocation5 + $0x8] sm:$0xff] 0.0
        $region56: #{tpu_custom_call.1} parent=35 // pred_fallthru
          _
        %v410 = vld [vmem:[%s319] sm:$0xff]
        %v411 = vld [vmem:[%s319 + $0x8] sm:$0xff]
        %v412 = vld [vmem:[%s319 + $0x10] sm:$0xff]
        %v413 = vld [vmem:[%s319 + $0x18] sm:$0xff]
        %v414 = vld [vmem:[%s337] sm:$0xf]
        %v415 = vrot.slane %v410, 4
        %v416 = vmax.f32 %v410, %v415
        %v417 = vrot.slane %v416, 2
        %v418 = vmax.f32 %v416, %v417
        %v419 = vrot.slane %v418, 1
        %v420 = vmax.f32 %v418, %v419
        %v421 = vrot.slane %v411, 4
        %v422 = vmax.f32 %v411, %v421
        %v423 = vrot.slane %v422, 2
        %v424 = vmax.f32 %v422, %v423
        %v425 = vrot.slane %v424, 1
        %v426 = vmax.f32 %v424, %v425
        %v427 = vrot.slane %v412, 4
        %v428 = vmax.f32 %v412, %v427
        %v429 = vrot.slane %v428, 2
        %v430 = vmax.f32 %v428, %v429
        %v431 = vrot.slane %v430, 1
        %v432 = vmax.f32 %v430, %v431
        %v433 = vrot.slane %v413, 4
        %v434 = vmax.f32 %v413, %v433
        %v435 = vrot.slane %v434, 2
        %v436 = vmax.f32 %v434, %v435
        %v437 = vrot.slane %v436, 1
        %v438 = vmax.f32 %v436, %v437
        %v439 = vsub.f32 %v410, %v420
        %v440 = vsub.f32 %v411, %v426
        %v441 = vsub.f32 %v412, %v432
        %v442 = vsub.f32 %v413, %v438
        %v443 = vmul.f32 %v439, 1.442695
        %v444 = vpow.pop %v443
        %v445 = vmul.f32 %v440, 1.442695
        %v446 = vpow.pop %v445
        %v447 = vmul.f32 %v441, 1.442695
        %v448 = vpow.pop %v447
        %v449 = vmul.f32 %v442, 1.442695
        %v450 = vpow.pop %v449
        %v451 = vrot.slane %v444, 4
        %v452 = vadd.f32 %v444, %v451
        %v453 = vrot.slane %v452, 2
        %v454 = vadd.f32 %v452, %v453
        %v455 = vrot.slane %v454, 1
        %v456 = vadd.f32 %v454, %v455
        %v457 = vrot.slane %v446, 4
        %v458 = vadd.f32 %v446, %v457
        %v459 = vrot.slane %v458, 2
        %v460 = vadd.f32 %v458, %v459
        %v461 = vrot.slane %v460, 1
        %v462 = vadd.f32 %v460, %v461
        %v463 = vrot.slane %v448, 4
        %v464 = vadd.f32 %v448, %v463
        %v465 = vrot.slane %v464, 2
        %v466 = vadd.f32 %v464, %v465
        %v467 = vrot.slane %v466, 1
        %v468 = vadd.f32 %v466, %v467
        %v469 = vrot.slane %v450, 4
        %v470 = vadd.f32 %v450, %v469
        %v471 = vrot.slane %v470, 2
        %v472 = vadd.f32 %v470, %v471
        %v473 = vrot.slane %v472, 1
        %v474 = vadd.f32 %v472, %v473
        %vm475 = vcmp.lt.s32.totalorder %v414, 0
        %v476 = vsel %vm475, 0, %v414
        %v477 = vlaneseq
        %v478 = vshrl.u32 %v477, 7
        %v479 = vlaneseq
        %v480 = vshrl.u32 %v479, 7
        %v481 = vsub.s32 0, %v480
        %v482 = vrot.slane %v476, %v481
        %v483 = vlaneseq
        %v484 = vshrl.u32 %v483, 7
        %v485 = vsub.s32 1, %v484
        %v486 = vrot.slane %v476, %v485
        %v487 = vlaneseq
        %v488 = vshrl.u32 %v487, 7
        %v489 = vsub.s32 2, %v488
        %v490 = vrot.slane %v476, %v489
        %v491 = vlaneseq
        %v492 = vshrl.u32 %v491, 7
        %v493 = vsub.s32 3, %v492
        %v494 = vrot.slane %v476, %v493
        %vm495 = vcmp.eq.s32.totalorder %v478, %v482
        %vm496 = vcmp.eq.s32.totalorder %v478, %v486
        %vm497 = vcmp.eq.s32.totalorder %v478, %v490
        %vm498 = vcmp.eq.s32.totalorder %v478, %v494
        %v499 = vsel %vm495, %v410, 0.0
        %v500 = vsel %vm496, %v411, 0.0
        %v501 = vsel %vm497, %v412, 0.0
        %v502 = vsel %vm498, %v413, 0.0
        %v503 = vrot.slane %v499, 4
        %v504 = vadd.f32 %v499, %v503
        %v505 = vrot.slane %v504, 2
        %v506 = vadd.f32 %v504, %v505
        %v507 = vrot.slane %v506, 1
        %v508 = vadd.f32 %v506, %v507
        %v509 = vrot.slane %v500, 4
        %v510 = vadd.f32 %v500, %v509
        %v511 = vrot.slane %v510, 2
        %v512 = vadd.f32 %v510, %v511
        %v513 = vrot.slane %v512, 1
        %v514 = vadd.f32 %v512, %v513
        %v515 = vrot.slane %v501, 4
        %v516 = vadd.f32 %v501, %v515
        %v517 = vrot.slane %v516, 2
        %v518 = vadd.f32 %v516, %v517
        %v519 = vrot.slane %v518, 1
        %v520 = vadd.f32 %v518, %v519
        %v521 = vrot.slane %v502, 4
        %v522 = vadd.f32 %v502, %v521
        %v523 = vrot.slane %v522, 2
        %v524 = vadd.f32 %v522, %v523
        %v525 = vrot.slane %v524, 1
        %v526 = vadd.f32 %v524, %v525
        %v527 = vlog2.pop %v456
        %v528 = vmul.f32 %v527, 0.6931472
        %v529 = vlog2.pop %v462
        %v530 = vmul.f32 %v529, 0.6931472
        %v531 = vlog2.pop %v468
        %v532 = vmul.f32 %v531, 0.6931472
        %v533 = vlog2.pop %v474
        %v534 = vmul.f32 %v533, 0.6931472
        %v535 = vadd.f32 %v528, %v420
        %v536 = vadd.f32 %v530, %v426
        %v537 = vadd.f32 %v532, %v432
        %v538 = vadd.f32 %v534, %v438
        %v539 = vsub.f32 %v535, %v508
        %v540 = vsub.f32 %v536, %v514
        %v541 = vsub.f32 %v537, %v520
        %v542 = vsub.f32 %v538, %v526
        %vm543 = vcmp.gt.s32.totalorder %v414, 0
        %v544 = vsel %vm543, 1, 0
        %v545 = vcvt.s32.f32 %v544
        %vm546 = vcmp.eq.s32.totalorder %v414, 0
        %v547 = vsel %vm546, 1, 0
        %v548 = vcvt.s32.f32 %v547
        %v550 = vlaneseq
        %v551 = vshrl.u32 %v550, 7
        %v552 = vsub.s32 0, %v551
        %v553 = vrot.slane %v548, %v552
        %v554 = vlaneseq
        %v555 = vshrl.u32 %v554, 7
        %v556 = vsub.s32 1, %v555
        %v557 = vrot.slane %v548, %v556
        %v558 = vlaneseq
        %v559 = vshrl.u32 %v558, 7
        %v560 = vsub.s32 2, %v559
        %v561 = vrot.slane %v548, %v560
        %v562 = vlaneseq
        %v563 = vshrl.u32 %v562, 7
        %v564 = vsub.s32 3, %v563
        %v565 = vrot.slane %v548, %v564
        %v570 = vmul.f32 %v539, %v553
        %v571 = vmul.f32 %v540, %v557
        %v572 = vmul.f32 %v541, %v561
        %v573 = vmul.f32 %v542, %v565
        %v578 = vcombine.low %v570, %v571
        %v579 = vcombine.low %v572, %v573
        %v581 = vunpack.c.l.s4 1966171168
        %v582 = vunpack.c.0.s8 %v581
        %v583 = vlaneseq
        %v584 = vshrl.u32 %v583, 7
        %v585 = vsub.s32 %v582, %v584
        %v586 = vrot.slane %v578, %v585
        %v588 = vunpack.c.l.s4 1966171168
        %v589 = vunpack.c.0.s8 %v588
        %v590 = vlaneseq
        %v591 = vshrl.u32 %v590, 7
        %v592 = vsub.s32 %v589, %v591
        %v593 = vrot.slane %v579, %v592
        %v594 = vcombine.low %v586, %v593
        %v596 = vunpack.c.l.s4 1966171168
        %v597 = vunpack.c.0.s8 %v596
        %v598 = vlaneseq
        %v599 = vshrl.u32 %v598, 7
        %v600 = vsub.s32 %v597, %v599
        %v601 = vrot.slane %v594, %v600
        %v603 = vlaneseq
        %vm604 = vcmp.ge.s32.totalorder %v603, 0
        %vm605 = vcmp.lt.s32.totalorder %v603, 512
        %vm606 = vmand %vm604, %vm605
        %607 = vst.msk [vmem:[%s385] sm:$0xf] %vm606, %v601
        %v608 = vld [vmem:[%s328] sm:$0xff]
        %v609 = vld [vmem:[%s328 + $0x8] sm:$0xff]
        %v610 = vld [vmem:[%s346] sm:$0xff]
        %v611 = vld [vmem:[%s346 + $0x8] sm:$0xff]
        %v612 = vsub.f32 %v608, %v610
        %v613 = vsub.f32 %v609, %v611
        %v614 = vand.u32 2147483647, %v612
        %v615 = vand.u32 2147483647, %v613
        %vm616 = vcmp.lt.f32.partialorder %v614, 1.0
        %vm617 = vcmp.lt.f32.partialorder %v615, 1.0
        %v618 = vmul.f32 %v612, 0.5
        %v619 = vmul.f32 %v613, 0.5
        %v620 = vmul.f32 %v618, %v612
        %v621 = vmul.f32 %v619, %v613
        %v622 = vsub.f32 %v614, 0.5
        %v623 = vsub.f32 %v615, 0.5
        %v624 = vsel %vm616, %v620, %v622
        %v625 = vsel %vm617, %v621, %v623
        %v627 = vlaneseq
        %v628 = vshrl.u32 %v627, 7
        %v629 = vsub.s32 0, %v628
        %v630 = vrot.slane %v545, %v629
        %v631 = vlaneseq
        %v632 = vshrl.u32 %v631, 7
        %v633 = vsub.s32 1, %v632
        %v634 = vrot.slane %v545, %v633
        %v635 = vlaneseq
        %v636 = vshrl.u32 %v635, 7
        %v637 = vsub.s32 2, %v636
        %v638 = vrot.slane %v545, %v637
        %v639 = vlaneseq
        %v640 = vshrl.u32 %v639, 7
        %v641 = vsub.s32 3, %v640
        %v642 = vrot.slane %v545, %v641
        %v643 = vcombine.low %v630, %v634
        %v644 = vcombine.low %v638, %v642
        %v647 = vmul.f32 %v624, %v643
        %v648 = vmul.f32 %v625, %v644
        %v649 = vld [vmem:[#allocation2] sm:$0xf]
        %v654 = vmul.f32 %v539, %v630
        %v655 = vmul.f32 %v540, %v634
        %v656 = vmul.f32 %v541, %v638
        %v657 = vmul.f32 %v542, %v642
        %v662 = vcombine.low %v654, %v655
        %v663 = vcombine.low %v656, %v657
        %v665 = vunpack.c.l.s4 1966171168
        %v666 = vunpack.c.0.s8 %v665
        %v667 = vlaneseq
        %v668 = vshrl.u32 %v667, 7
        %v669 = vsub.s32 %v666, %v668
        %v670 = vrot.slane %v662, %v669
        %v672 = vunpack.c.l.s4 1966171168
        %v673 = vunpack.c.0.s8 %v672
        %v674 = vlaneseq
        %v675 = vshrl.u32 %v674, 7
        %v676 = vsub.s32 %v673, %v675
        %v677 = vrot.slane %v663, %v676
        %v678 = vcombine.low %v670, %v677
        %v680 = vunpack.c.l.s4 1966171168
        %v681 = vunpack.c.0.s8 %v680
        %v682 = vlaneseq
        %v683 = vshrl.u32 %v682, 7
        %v684 = vsub.s32 %v681, %v683
        %v685 = vrot.slane %v678, %v684
        %v687 = vadd.f32 %v649, %v685
        %688 = vst.msk [vmem:[#allocation2] sm:$0xf] %vm606, %v687
        %v689 = vld [vmem:[#allocation3] sm:$0xf]
        %v690 = vadd.f32 %v689, %v545
        %691 = vst.msk [vmem:[#allocation3] sm:$0xf] %vm606, %v690
        %v692 = vld [vmem:[#allocation4] sm:$0xf]
        %v693 = vadd.f32 %v692, %v548
        %694 = vst.msk [vmem:[#allocation4] sm:$0xf] %vm606, %v693
        %v695 = vld [vmem:[#allocation5] sm:$0xff]
        %v696 = vld [vmem:[#allocation5 + $0x8] sm:$0xff]
        %v697 = vadd.f32 %v695, %v647
        %v698 = vadd.f32 %v696, %v648
        %699 = vst [vmem:[#allocation5] sm:$0xff] %v697
        %700 = vst [vmem:[#allocation5 + $0x8] sm:$0xff] %v698
        // Predicated region
        $region57: #{tpu_custom_call.1} parent=35 // pred_check
          %p701 = pneg %p397
        $region58: #{tpu_custom_call.1} parent=35 // pred_check_branch
          %703 = sbr.rel (%p701) target = $region60
        $region59: #{tpu_custom_call.1} parent=35 // pred_region
          %v704 = vld [vmem:[#allocation2] sm:$0xf]
          %v706 = vlaneseq
          %v707 = vshrl.u32 %v706, 7
          %v708 = vsub.s32 0, %v707
          %v709 = vrot.slane %v704, %v708
          %v710 = vlaneseq
          %v711 = vshrl.u32 %v710, 7
          %v712 = vsub.s32 1, %v711
          %v713 = vrot.slane %v704, %v712
          %v714 = vlaneseq
          %v715 = vshrl.u32 %v714, 7
          %v716 = vsub.s32 2, %v715
          %v717 = vrot.slane %v704, %v716
          %v718 = vlaneseq
          %v719 = vshrl.u32 %v718, 7
          %v720 = vsub.s32 3, %v719
          %v721 = vrot.slane %v704, %v720
          %vm726 = vcmask 1040384
          %v727 = vsel %vm726, %v709, 0.0
          %v728 = vsel %vm726, %v713, 0.0
          %v729 = vadd.f32 %v727, %v728
          %v730 = vsel %vm726, %v717, 0.0
          %v731 = vadd.f32 %v729, %v730
          %v732 = vsel %vm726, %v721, 0.0
          %v733 = vadd.f32 %v731, %v732
          %734 = vadd.xlane.f32.xlu0 %v733
          %v735 = vpop.xlane.xlu0 %734
          %v736 = vrot.slane %v735, 4
          %v737 = vadd.f32 %v735, %v736
          %v738 = vrot.slane %v737, 2
          %v739 = vadd.f32 %v737, %v738
          %v740 = vrot.slane %v739, 1
          %v741 = vadd.f32 %v739, %v740
          %s742 = vtos %v741
          %v743 = vld [vmem:[#allocation3] sm:$0xf]
          %v745 = vlaneseq
          %v746 = vshrl.u32 %v745, 7
          %v747 = vsub.s32 0, %v746
          %v748 = vrot.slane %v743, %v747
          %v749 = vlaneseq
          %v750 = vshrl.u32 %v749, 7
          %v751 = vsub.s32 1, %v750
          %v752 = vrot.slane %v743, %v751
          %v753 = vlaneseq
          %v754 = vshrl.u32 %v753, 7
          %v755 = vsub.s32 2, %v754
          %v756 = vrot.slane %v743, %v755
          %v757 = vlaneseq
          %v758 = vshrl.u32 %v757, 7
          %v759 = vsub.s32 3, %v758
          %v760 = vrot.slane %v743, %v759
          %v765 = vsel %vm726, %v748, 0.0
          %v766 = vsel %vm726, %v752, 0.0
          %v767 = vadd.f32 %v765, %v766
          %v768 = vsel %vm726, %v756, 0.0
          %v769 = vadd.f32 %v767, %v768
          %v770 = vsel %vm726, %v760, 0.0
          %v771 = vadd.f32 %v769, %v770
          %772 = vadd.xlane.f32.xlu0 %v771
          %v773 = vpop.xlane.xlu0 %772
          %v774 = vrot.slane %v773, 4
          %v775 = vadd.f32 %v773, %v774
          %v776 = vrot.slane %v775, 2
          %v777 = vadd.f32 %v775, %v776
          %v778 = vrot.slane %v777, 1
          %v779 = vadd.f32 %v777, %v778
          %s780 = vtos %v779
          %v781 = vld [vmem:[#allocation4] sm:$0xf]
          %v783 = vlaneseq
          %v784 = vshrl.u32 %v783, 7
          %v785 = vsub.s32 0, %v784
          %v786 = vrot.slane %v781, %v785
          %v787 = vlaneseq
          %v788 = vshrl.u32 %v787, 7
          %v789 = vsub.s32 1, %v788
          %v790 = vrot.slane %v781, %v789
          %v791 = vlaneseq
          %v792 = vshrl.u32 %v791, 7
          %v793 = vsub.s32 2, %v792
          %v794 = vrot.slane %v781, %v793
          %v795 = vlaneseq
          %v796 = vshrl.u32 %v795, 7
          %v797 = vsub.s32 3, %v796
          %v798 = vrot.slane %v781, %v797
          %v803 = vsel %vm726, %v786, 0.0
          %v804 = vsel %vm726, %v790, 0.0
          %v805 = vadd.f32 %v803, %v804
          %v806 = vsel %vm726, %v794, 0.0
          %v807 = vadd.f32 %v805, %v806
          %v808 = vsel %vm726, %v798, 0.0
          %v809 = vadd.f32 %v807, %v808
          %810 = vadd.xlane.f32.xlu0 %v809
          %v811 = vpop.xlane.xlu0 %810
          %v812 = vrot.slane %v811, 4
          %v813 = vadd.f32 %v811, %v812
          %v814 = vrot.slane %v813, 2
          %v815 = vadd.f32 %v813, %v814
          %v816 = vrot.slane %v815, 1
          %v817 = vadd.f32 %v815, %v816
          %s818 = vtos %v817
          %v819 = vld [vmem:[#allocation5] sm:$0xff]
          %v820 = vld [vmem:[#allocation5 + $0x8] sm:$0xff]
          %v823 = vcombine.high %v819, %v819
          %v824 = vcombine.high %v820, %v820
          %vm827 = vcmask 1043456
          %v828 = vsel %vm827, %v819, 0.0
          %v829 = vsel %vm827, %v823, 0.0
          %v830 = vadd.f32 %v828, %v829
          %v831 = vsel %vm827, %v820, 0.0
          %v832 = vadd.f32 %v830, %v831
          %v833 = vsel %vm827, %v824, 0.0
          %v834 = vadd.f32 %v832, %v833
          %835 = vadd.xlane.f32.xlu0 %v834
          %v836 = vpop.xlane.xlu0 %835
          %v837 = vrot.slane %v836, 4
          %v838 = vadd.f32 %v836, %v837
          %v839 = vrot.slane %v838, 2
          %v840 = vadd.f32 %v838, %v839
          %v841 = vrot.slane %v840, 1
          %v842 = vadd.f32 %v840, %v841
          %s843 = vtos %v842
          %v844 = vlaneseq
          %v845 = vand.u32 %v844, 127
          %vm846 = vcmp.eq.s32.totalorder %v845, 0
          %v847 = vstv %s742
          %v848 = vsel %vm846, %v847, 0.0
          %vm849 = vcmp.eq.s32.totalorder %v845, 1
          %v850 = vstv %s780
          %v851 = vsel %vm849, %v850, 0.0
          %v852 = vadd.f32 %v848, %v851
          %vm853 = vcmp.eq.s32.totalorder %v845, 2
          %v854 = vstv %s818
          %v855 = vsel %vm853, %v854, 0.0
          %v856 = vadd.f32 %v852, %v855
          %vm857 = vcmp.eq.s32.totalorder %v845, 3
          %v858 = vstv %s843
          %v859 = vsel %vm857, %v858, 0.0
          %v860 = vadd.f32 %v856, %v859
          %861 = vst [vmem:[%s391] sm:$0x1] %v860
        $region60: #{tpu_custom_call.1} parent=35 // pred_fallthru
          _
        %s862 = sand.u32 %s166, 1
        %s863 = scalar_lea.sflag [#allocation8], %s862
        %s864 = sand.u32 %s166, 1
        %s865 = smul.addr %s864, 4
        %s866 = scalar_lea.vmem [#allocation14], %s865
        %s867 = sand.u32 %s192, 1
        %s868 = scalar_lea.sflag [#allocation16], %s867
        %s869 = sand.u32 %s192, 1
        %s870 = scalar_lea.vmem [#allocation15], %s869
        // Predicated region
        $region61: #{tpu_custom_call.1} parent=35 // pred_check
          %p871 = pneg %p176
        $region62: #{tpu_custom_call.1} parent=35 // pred_check_branch
          %873 = sbr.rel (%p871) target = $region64
        $region63: #{tpu_custom_call.1} parent=35 // pred_region
          %s874 = smul.u32 4, %s37
          %s876 = ssub.s32 64, 64
          %877 = vsyncadd %s863, %s876
          %s878 = smul.addr %s36, 4
          %s879 = sadd.s32 %s874, %s878
          %s880 = smul.addr %s879, 16
          %s881 = scalar_lea.hbm %s4, %s880
          %s883 = sshll.u32 %s866, 4
          %s884 = int_to_ptr.vmem [resolvable:$true] %s883
          %886 = dma.vmem_to_hbm [thread:$0]  %s884, 64, %s881, %s863
        $region64: #{tpu_custom_call.1} parent=35 // pred_fallthru
          _
        // Predicated region
        $region65: #{tpu_custom_call.1} parent=35 // pred_check
          %p887 = pneg %p202
        $region66: #{tpu_custom_call.1} parent=35 // pred_check_branch
          %889 = sbr.rel (%p887) target = $region68
        $region67: #{tpu_custom_call.1} parent=35 // pred_region
          %s891 = ssub.s32 16, 16
          %892 = vsyncadd %s868, %s891
          %s893 = smul.addr %s36, 16
          %s894 = scalar_lea.hbm %s5, %s893
          %s896 = sshll.u32 %s870, 4
          %s897 = int_to_ptr.vmem [resolvable:$true] %s896
          %899 = dma.vmem_to_hbm [thread:$0]  %s897, 16, %s894, %s868
        $region68: #{tpu_custom_call.1} parent=35 // pred_fallthru
          _
      $region36: #{tpu_custom_call.1} parent=5 // pred_fallthru
        _
      %p900 = scmp.le.s32.totalorder 2, %s27
      // Predicated region
      $region69: #{tpu_custom_call.1} parent=5 // pred_check
        %p901 = pneg %p900
      $region70: #{tpu_custom_call.1} parent=5 // pred_check_branch
        %903 = sbr.rel (%p901) target = $region72
      $region71: #{tpu_custom_call.1} parent=5 // pred_region
        %s904 = ssub.s32 %s27, 2
        // Predicated region
        $region73: #{tpu_custom_call.1} parent=71 // pred_check
          %p905 = pneg %p182
        $region74: #{tpu_custom_call.1} parent=71 // pred_check_branch
          %907 = sbr.rel (%p905) target = $region76
        $region75: #{tpu_custom_call.1} parent=71 // pred_region
          %s908 = sand.u32 %s167, 1
          %s909 = scalar_lea.sflag [#allocation8], %s908
          %s910 = sand.u32 %s167, 1
          %s911 = smul.addr %s910, 4
          %s912 = scalar_lea.vmem [#allocation14], %s911
          %913 = dma.done %s909, 64
        $region76: #{tpu_custom_call.1} parent=71 // pred_fallthru
          _
        // Predicated region
        $region77: #{tpu_custom_call.1} parent=71 // pred_check
          %p914 = pneg %p208
        $region78: #{tpu_custom_call.1} parent=71 // pred_check_branch
          %916 = sbr.rel (%p914) target = $region80
        $region79: #{tpu_custom_call.1} parent=71 // pred_region
          %s917 = sand.u32 %s193, 1
          %s918 = scalar_lea.sflag [#allocation16], %s917
          %s919 = sand.u32 %s193, 1
          %s920 = scalar_lea.vmem [#allocation15], %s919
          %921 = dma.done %s918, 16
        $region80: #{tpu_custom_call.1} parent=71 // pred_fallthru
          _
      $region72: #{tpu_custom_call.1} parent=5 // pred_fallthru
        _
    $region6: #{tpu_custom_call.1} parent=1 // loop_footer
      %s31 = sadd.s32 1, %s27
    $region7: #{tpu_custom_call.1} parent=1 // loop_footer_branch
      %26 = sbr.rel target = $region3
    $region8: #{tpu_custom_call.1} parent=1 // loop_exit
      _
    %922 = vsyncpa [#allocation7], 1
    %s923 = scalar_lea.sflag [#allocation7], 1
    %924 = vsyncpa %s923, 1
    %925 = vsyncpa [#allocation10], 1
    %s926 = scalar_lea.sflag [#allocation10], 1
    %927 = vsyncpa %s926, 1
    %928 = vsyncpa [#allocation13], 1
    %s929 = scalar_lea.sflag [#allocation13], 1
    %930 = vsyncpa %s929, 1
    %931 = vsyncpa [#allocation8], 1
    %s932 = scalar_lea.sflag [#allocation8], 1
    %933 = vsyncpa %s932, 1
    %934 = vsyncpa [#allocation16], 1
    %s935 = scalar_lea.sflag [#allocation16], 1
    %936 = vsyncpa %s935, 1

</llo_original>
